<compile_context>
chip_gen: v5e
topology: v5e:2x2
jax: 0.10.0
libtpu: 0.0.40
codegen_flags: <defaults>
</compile_context>

<pallas_src>
import functools

import jax
import jax.numpy as jnp
from jax.experimental import pallas as pl
from jax.experimental.pallas import tpu as pltpu

_MIB = 1024 * 1024


# ---------------------------------------------------------------------------
# Kernels
# ---------------------------------------------------------------------------

def _combine_rows_kernel(img_ref, msk_ref, out_ref, *, hw: int, n_copies: int):
    """Lane-dense path: channel*spatial flattened into the lane dimension.

    img_ref : (F, 3*hw)            VMEM block
    msk_ref : (F, 1*hw)            VMEM block
    out_ref : (F, 4*n_copies*hw)   VMEM block, per-frame row = [img, msk] * n_copies

    Slab boundaries sit at multiples of hw, so for hw % 128 == 0 every store is
    a full-width unmasked vst.  Each slab is stored straight from the input ref
    (no materialized cast temporary).
    """
    for c in range(n_copies):
        base = 4 * c * hw
        out_ref[:, base:base + 3 * hw] = img_ref[...].astype(out_ref.dtype)
        out_ref[:, base + 3 * hw:base + 4 * hw] = msk_ref[...].astype(out_ref.dtype)


def _combine_chan_kernel(img_ref, msk_ref, out_ref, *, n_copies: int):
    """Spatially-tiled path for large frames.

    img_ref : (F, 3, L), msk_ref : (F, 1, L), out_ref : (F, 4*n_copies, L)
    """
    for c in range(n_copies):
        out_ref[:, 4 * c:4 * c + 3, :] = img_ref[...].astype(out_ref.dtype)
        out_ref[:, 4 * c + 3:4 * c + 4, :] = msk_ref[...].astype(out_ref.dtype)


# ---------------------------------------------------------------------------
# Tiling policy
# ---------------------------------------------------------------------------

def _vmem_capacity_bytes() -> int:
    try:
        info = pltpu.get_tpu_info()
        cap = int(getattr(info, "vmem_capacity_bytes", 0) or 0)
        if cap > 0:
            return cap
    except Exception:
        pass
    return 64 * _MIB  # conservative default: v7x physical VMEM per TensorCore


def _sublane_align(*dtypes) -> int:
    """Frame-row alignment: 8 for 32-bit, 16 for 16-bit, 32 for 8-bit dtypes."""
    a = 8
    for dt in dtypes:
        isz = max(1, jnp.dtype(dt).itemsize)
        a = max(a, 8 * max(1, 4 // isz))
    return a


def _budgets(max_block_bytes=None):
    """Returns (physical_vmem_capacity, single-step in+out block budget)."""
    cap = _vmem_capacity_bytes()
    # Working set = double-buffered in+out blocks ~= half of physical VMEM
    # (≈32 MiB on v7x, ≈64 MiB on v5e/v6e); per-step block budget is half that.
    working = min(max(cap // 2, 16 * _MIB), 72 * _MIB)
    step = working // 2
    if max_block_bytes is not None:
        step = max(int(max_block_bytes), 1)
    return cap, step


def _frames_per_block(n_frames, per_frame_bytes, step_budget, align):
    """Frames per block for the lane-dense path; 0 => use the spatial path."""
    frames_fit = step_budget // per_frame_bytes
    if frames_fit >= n_frames:
        # Whole problem fits in one block: still split into ~4 pipelined steps
        # (DMA/compute overlap + work for both v7x TensorCores) while keeping
        # F sublane-aligned.
        quarter = -(-n_frames // 4)
        target = max(align, ((quarter + align - 1) // align) * align)
        if target < n_frames:
            return target
        if n_frames % (2 * align) == 0:
            return n_frames // 2
        return n_frames
    f = (frames_fit // align) * align
    if f >= align:
        return min(f, n_frames)
    return 0  # even `align` frames exceed the budget -> spatial tiling


def _lane_chunk(hw, l_max):
    """Largest multiple of 128 dividing hw that is <= l_max (else hw)."""
    if hw % 128 != 0 or l_max >= hw:
        return hw
    l_max = max(128, (l_max // 128) * 128)
    best = 128
    d = 128
    while d <= l_max:
        if hw % d == 0:
            best = d
        d += 128
    return best


# ---------------------------------------------------------------------------
# Public wrapper
# ---------------------------------------------------------------------------

def combined_images_pallas(images, masks, *, out_dtype=None, duplicate_crop=True,
                           max_block_bytes=None):
    """images (B,S,3,H,W), masks (B,S,1,H,W) -> (B*S, 8, H, W).

    duplicate_crop=False skips materializing crop_images (a bit-exact clone of
    full_images) and returns (B*S, 4, H, W): consumers can read the 4-channel
    buffer twice, cutting HBM traffic by 1/3.  out_dtype (e.g. bf16) halves the
    write half for a bf16 vision tower; defaults preserve PyTorch semantics.
    """
    if images.ndim != 5 or masks.ndim != 5:
        raise ValueError(
            f"Expected 5D tensor inputs, got shapes {images.shape} and {masks.shape}")
    B, S, C_img, H, W = images.shape
    if C_img != 3:
        raise ValueError("images must have 3 channels")
    if masks.shape != (B, S, 1, H, W):
        raise ValueError("masks must have 1 channel and match images batch/seq/spatial")

    out_dtype = jnp.dtype(images.dtype if out_dtype is None else out_dtype)
    n_copies = 2 if duplicate_crop else 1
    c_out = 4 * n_copies
    N = B * S
    HW = H * W

    isz_i = jnp.dtype(images.dtype).itemsize
    isz_m = jnp.dtype(masks.dtype).itemsize
    isz_o = out_dtype.itemsize

    cap, step_budget = _budgets(max_block_bytes)
    align = _sublane_align(images.dtype, masks.dtype, out_dtype)
    per_frame_bytes = HW * (3 * isz_i + isz_m + c_out * isz_o)

    F = _frames_per_block(N, per_frame_bytes, step_budget, align)

    if F > 0:
        # ---- Path A: lane-dense 2D views, frame blocks only -------------
        images2d = images.reshape(N, 3 * HW)
        masks2d = masks.reshape(N, HW)
        vmem_limit = min(int(0.9 * cap), max(32 * _MIB, 3 * F * per_frame_bytes))

        out2d = pl.pallas_call(
            functools.partial(_combine_rows_kernel, hw=HW, n_copies=n_copies),
            out_shape=jax.ShapeDtypeStruct((N, c_out * HW), out_dtype),
            grid_spec=pltpu.PrefetchScalarGridSpec(
                num_scalar_prefetch=0,
                grid=(pl.cdiv(N, F),),
                in_specs=[
                    pl.BlockSpec((F, 3 * HW), lambda n: (n, 0)),
                    pl.BlockSpec((F, HW), lambda n: (n, 0)),
                ],
                out_specs=pl.BlockSpec((F, c_out * HW), lambda n: (n, 0)),
            ),
            compiler_params=pltpu.CompilerParams(
                dimension_semantics=("parallel",),
                vmem_limit_bytes=vmem_limit,
            ),
        )(images2d, masks2d)
        return out2d.reshape(N, c_out, H, W)

    # ---- Path B: large frames -> tile a second grid axis over HW --------
    images3d = images.reshape(N, 3, HW)
    masks3d = masks.reshape(N, 1, HW)
    # Sublane-padded VMEM bytes per lane element (3->8 and 1->8 sublane pad).
    padded_row_bytes = 8 * (isz_i + isz_m + isz_o)
    l_budget = max(128, step_budget // padded_row_bytes)
    if l_budget >= HW:
        L = HW
        Fb = max(1, min(N, step_budget // (HW * padded_row_bytes)))
    else:
        Fb = 1
        L = _lane_chunk(HW, l_budget)
    vmem_limit = min(int(0.9 * cap),
                     max(32 * _MIB, 3 * Fb * L * padded_row_bytes))

    out3d = pl.pallas_call(
        functools.partial(_combine_chan_kernel, n_copies=n_copies),
        out_shape=jax.ShapeDtypeStruct((N, c_out, HW), out_dtype),
        grid_spec=pltpu.PrefetchScalarGridSpec(
            num_scalar_prefetch=0,
            grid=(pl.cdiv(N, Fb), pl.cdiv(HW, L)),
            in_specs=[
                pl.BlockSpec((Fb, 3, L), lambda n, l: (n, 0, l)),
                pl.BlockSpec((Fb, 1, L), lambda n, l: (n, 0, l)),
            ],
            out_specs=pl.BlockSpec((Fb, c_out, L), lambda n, l: (n, 0, l)),
        ),
        compiler_params=pltpu.CompilerParams(
            dimension_semantics=("parallel", "parallel"),
            vmem_limit_bytes=vmem_limit,
        ),
    )(images3d, masks3d)
    return out3d.reshape(N, c_out, H, W)


def combined_images_ref(images, masks, duplicate_crop=True):
    """Pure-JAX reference mirroring the PyTorch forward tensor path."""
    B, S, _, H, W = images.shape
    images_r = images.reshape(B * S, 3, H, W)
    masks_r = masks.reshape(B * S, 1, H, W)
    full = jnp.concatenate([images_r, masks_r], axis=1)
    if not duplicate_crop:
        return full
    crop = full  # .clone()
    return jnp.concatenate([full, crop], axis=1)


if __name__ == "__main__":
    key = jax.random.PRNGKey(0)
    k_img, k_msk = jax.random.split(key)

    # Small shapes consistent with the module: batch=2, sequence=8 frames
    # (the prompt contains 8 <image> tokens), 3-channel images, 16x16 spatial.
    B, S, H, W = 2, 8, 16, 16
    images = jax.random.normal(k_img, (B, S, 3, H, W), dtype=jnp.float32)
    masks = (jax.random.uniform(k_msk, (B, S, 1, H, W)) > 0.5).astype(jnp.float32)

    ref8 = combined_images_ref(images, masks)

    # 1) Default lane-dense path: exact PyTorch semantics, (N, 8, H, W).
    out = jax.block_until_ready(combined_images_pallas(images, masks))
    assert out.shape == (B * S, 8, H, W), out.shape
    assert jnp.array_equal(out, ref8), "lane-dense path mismatch vs reference"

    # 2) Spatially-tiled large-frame path, forced via a tiny per-step budget.
    out_sp = jax.block_until_ready(
        combined_images_pallas(images, masks, max_block_bytes=16 * 1024))
    assert out_sp.shape == (B * S, 8, H, W), out_sp.shape
    assert jnp.array_equal(out_sp, ref8), "spatial-tiled path mismatch vs reference"

    # 3) Clone-elided variant (crop_images is a bit-exact copy of full_images).
    out4 = jax.block_until_ready(
        combined_images_pallas(images, masks, duplicate_crop=False))
    assert out4.shape == (B * S, 4, H, W), out4.shape
    assert jnp.array_equal(out4, ref8[:, :4]), "clone-elided path mismatch vs reference"

    print("KERNEL_OK")
</pallas_src>

<mosaic_0001>
module attributes {stable_mosaic.version = 11 : i64} {
  func.func @_combine_rows_kernel(%arg0: i32, %arg1: memref<8x768xf32, #tpu.memory_space<vmem>>, %arg2: memref<8x256xf32, #tpu.memory_space<vmem>>, %arg3: memref<8x2048xf32, #tpu.memory_space<vmem>>) attributes {dimension_semantics = [#tpu.dimension_semantics<parallel>], iteration_bounds = array<i64: 2>, scalar_prefetch = 0 : i64, scratch_operands = 0 : i64, tpu.core_type = #tpu.core_type<tc>, window_params = [{transform_indices = @transform_0, window_bounds = array<i64: 8, 768>}, {transform_indices = @transform_1, window_bounds = array<i64: 8, 256>}, {transform_indices = @transform_2, window_bounds = array<i64: 8, 2048>}]} {
    %c0 = arith.constant 0 : index
    %c0_0 = arith.constant 0 : index
    %0 = vector.load %arg1[%c0, %c0_0] : memref<8x768xf32, #tpu.memory_space<vmem>>, vector<8x768xf32>
    %c0_1 = arith.constant 0 : index
    %c0_2 = arith.constant 0 : index
    %1 = vector.load %arg3[%c0_1, %c0_2] : memref<8x2048xf32, #tpu.memory_space<vmem>>, vector<8x768xf32>
    tpu.vector_store %arg3[%c0_1, %c0_2], %0 {strides = array<i32>} : memref<8x2048xf32, #tpu.memory_space<vmem>>, vector<8x768xf32>,
    %c0_3 = arith.constant 0 : index
    %c0_4 = arith.constant 0 : index
    %2 = vector.load %arg2[%c0_3, %c0_4] : memref<8x256xf32, #tpu.memory_space<vmem>>, vector<8x256xf32>
    %c0_5 = arith.constant 0 : index
    %c768 = arith.constant 768 : index
    %3 = vector.load %arg3[%c0_5, %c768] : memref<8x2048xf32, #tpu.memory_space<vmem>>, vector<8x256xf32>
    tpu.vector_store %arg3[%c0_5, %c768], %2 {strides = array<i32>} : memref<8x2048xf32, #tpu.memory_space<vmem>>, vector<8x256xf32>,
    %c0_6 = arith.constant 0 : index
    %c0_7 = arith.constant 0 : index
    %4 = vector.load %arg1[%c0_6, %c0_7] : memref<8x768xf32, #tpu.memory_space<vmem>>, vector<8x768xf32>
    %c0_8 = arith.constant 0 : index
    %c1024 = arith.constant 1024 : index
    %5 = vector.load %arg3[%c0_8, %c1024] : memref<8x2048xf32, #tpu.memory_space<vmem>>, vector<8x768xf32>
    tpu.vector_store %arg3[%c0_8, %c1024], %4 {strides = array<i32>} : memref<8x2048xf32, #tpu.memory_space<vmem>>, vector<8x768xf32>,
    %c0_9 = arith.constant 0 : index
    %c0_10 = arith.constant 0 : index
    %6 = vector.load %arg2[%c0_9, %c0_10] : memref<8x256xf32, #tpu.memory_space<vmem>>, vector<8x256xf32>
    %c0_11 = arith.constant 0 : index
    %c1792 = arith.constant 1792 : index
    %7 = vector.load %arg3[%c0_11, %c1792] : memref<8x2048xf32, #tpu.memory_space<vmem>>, vector<8x256xf32>
    tpu.vector_store %arg3[%c0_11, %c1792], %6 {strides = array<i32>} : memref<8x2048xf32, #tpu.memory_space<vmem>>, vector<8x256xf32>,
    return
  }
  func.func @transform_0(%arg0: i32) -> (i32, i32) {
    %c0_i32 = arith.constant 0 : i32
    %c0_i32_0 = arith.constant 0 : i32
    return %arg0, %c0_i32 : i32, i32
  }
  func.func @transform_1(%arg0: i32) -> (i32, i32) {
    %c0_i32 = arith.constant 0 : i32
    %c0_i32_0 = arith.constant 0 : i32
    return %arg0, %c0_i32 : i32, i32
  }
  func.func @transform_2(%arg0: i32) -> (i32, i32) {
    %c0_i32 = arith.constant 0 : i32
    %c0_i32_0 = arith.constant 0 : i32
    return %arg0, %c0_i32 : i32, i32
  }
}

</mosaic_0001>

<llo_original>
// kernel: tpu_custom_call.1
$region0: #{tpu_custom_call.1}
  #allocation0 [shape = 'u32[]', space=smem, size = 0x4, offset = 0x4, fixed_abs, tag = 'smem constant byte address 0x4 - core index']
  #allocation1 [shape = 'u32[72,128]{1,0:T(1,128)}', space=vmem, size = 0x9000, scoped, tag = 'internal scratch']
  %s0 = inlined_call_operand.hbm [shape: f32[16,768], index: 0, kind: input, shape index: {}]
  %s1 = inlined_call_operand.hbm [shape: f32[16,256], index: 1, kind: input, shape index: {}]
  %s2 = inlined_call_operand.hbm [shape: f32[16,2048], index: 2, kind: output, shape index: {}]
  %s3 = sld [smem:[#allocation0]]
  $region49: #{tpu_custom_call.1} parent=0
    _
  %s5 = ssub.s32 1, %s3
  %s6 = scalar_select 0, %s5, %s3
  $region1: #{tpu_custom_call.1} parent=0
    #allocation2 [shape = 'u8[49152]{0}', space=vmem, size = 0xc000, scoped, tag = 'input window, operand 0']
    #allocation3 [shape = 's32[2]{0}', space=sflag, size = 0x8, scoped, tag = 'scoped memory for tpu_custom_call.1']
    #allocation4 [shape = 's32[2]{0}', space=sflag, size = 0x8, scoped, tag = 'scoped memory for tpu_custom_call.1']
    #allocation5 [shape = 'u8[16384]{0}', space=vmem, size = 0x4000, scoped, tag = 'input window, operand 1']
    #allocation6 [shape = 's32[2]{0}', space=sflag, size = 0x8, scoped, tag = 'scoped memory for tpu_custom_call.1']
    #allocation7 [shape = 'u8[131072]{0}', space=vmem, size = 0x20000, scoped, tag = 'output window, operand 0']
    %7 = vsyncpa [#allocation3], 0
    %s8 = scalar_lea.sflag [#allocation3], 1
    %9 = vsyncpa %s8, 0
    %10 = vsyncpa [#allocation6], 0
    %s11 = scalar_lea.sflag [#allocation6], 1
    %12 = vsyncpa %s11, 0
    %13 = vsyncpa [#allocation4], 0
    %s14 = scalar_lea.sflag [#allocation4], 1
    %15 = vsyncpa %s14, 0
    loop: start=0, step=1, limit=4
    $region2: #{tpu_custom_call.1} parent=1 // loop_pre_header
      _
    $region3: #{tpu_custom_call.1} parent=1 // loop_header
      %s17 = sphi 0, %s21
      %p18 = scmp.ge.s32.totalorder %s17, 4
      %s27 = sphi 0, %s29
      %s30 = sphi 0, %s27
      %s31 = sphi 0, %s30
      %s47 = sphi 0, %s31
      %s53 = sphi 0, %s55
      %s56 = sphi 0, %s53
      %s57 = sphi 0, %s56
      %s73 = sphi 0, %s57
      %s79 = sphi 0, %s81
      %s82 = sphi 0, %s79
      %s83 = sphi 0, %s82
      %s99 = sphi 0, %s83
    $region4: #{tpu_custom_call.1} parent=1 // loop_header_branch
      %20 = sbr.rel (%p18) target = $region8
    $region5: #{tpu_custom_call.1} parent=1 // loop_body
      %s22 = ssub.s32 %s17, 1
      %s23 = ssub.s32 %s17, 2
      %s24 = sadd.s32 %s17, 1
      %s25 = ssub.s32 %s17, %s24
      %p26 = scmp.eq.s32.totalorder %s25, 0
      %s28 = sadd.s32 %s27, 1
      %s29 = scalar_select %p26, %s27, %s28
      %p32 = pneg %p26
      %p33 = scmp.eq.s32.totalorder %s17, 1
      %p34 = por %p32, %p33
      %p35 = scmp.ne.s32.totalorder %s27, %s30
      %p36 = scmp.eq.s32.totalorder %s17, 0
      %p37 = por %p35, %p36
      %p38 = scmp.ne.s32.totalorder %s27, %s30
      %p39 = scmp.eq.s32.totalorder %s22, 1
      %p40 = por %p38, %p39
      %p41 = scmp.ne.s32.totalorder %s30, %s31
      %p42 = scmp.eq.s32.totalorder %s22, 0
      %p43 = por %p41, %p42
      %p44 = scmp.ne.s32.totalorder %s30, %s31
      %p45 = scmp.eq.s32.totalorder %s23, 1
      %p46 = por %p44, %p45
      %p48 = scmp.ne.s32.totalorder %s31, %s47
      %p49 = scmp.eq.s32.totalorder %s23, 0
      %p50 = por %p48, %p49
      %s51 = ssub.s32 %s17, %s24
      %p52 = scmp.eq.s32.totalorder %s51, 0
      %s54 = sadd.s32 %s53, 1
      %s55 = scalar_select %p52, %s53, %s54
      %p58 = pneg %p52
      %p59 = scmp.eq.s32.totalorder %s17, 1
      %p60 = por %p58, %p59
      %p61 = scmp.ne.s32.totalorder %s53, %s56
      %p62 = scmp.eq.s32.totalorder %s17, 0
      %p63 = por %p61, %p62
      %p64 = scmp.ne.s32.totalorder %s53, %s56
      %p65 = scmp.eq.s32.totalorder %s22, 1
      %p66 = por %p64, %p65
      %p67 = scmp.ne.s32.totalorder %s56, %s57
      %p68 = scmp.eq.s32.totalorder %s22, 0
      %p69 = por %p67, %p68
      %p70 = scmp.ne.s32.totalorder %s56, %s57
      %p71 = scmp.eq.s32.totalorder %s23, 1
      %p72 = por %p70, %p71
      %p74 = scmp.ne.s32.totalorder %s57, %s73
      %p75 = scmp.eq.s32.totalorder %s23, 0
      %p76 = por %p74, %p75
      %s77 = ssub.s32 %s17, %s24
      %p78 = scmp.eq.s32.totalorder %s77, 0
      %s80 = sadd.s32 %s79, 1
      %s81 = scalar_select %p78, %s79, %s80
      %p84 = pneg %p78
      %p85 = scmp.eq.s32.totalorder %s17, 1
      %p86 = por %p84, %p85
      %p87 = scmp.ne.s32.totalorder %s79, %s82
      %p88 = scmp.eq.s32.totalorder %s17, 0
      %p89 = por %p87, %p88
      %p90 = scmp.ne.s32.totalorder %s79, %s82
      %p91 = scmp.eq.s32.totalorder %s22, 1
      %p92 = por %p90, %p91
      %p93 = scmp.ne.s32.totalorder %s82, %s83
      %p94 = scmp.eq.s32.totalorder %s22, 0
      %p95 = por %p93, %p94
      %p96 = scmp.ne.s32.totalorder %s82, %s83
      %p97 = scmp.eq.s32.totalorder %s23, 1
      %p98 = por %p96, %p97
      %p100 = scmp.ne.s32.totalorder %s83, %s99
      %p101 = scmp.eq.s32.totalorder %s23, 0
      %p102 = por %p100, %p101
      %p103 = scmp.le.s32.totalorder 1, %s17
      %p104 = scmp.lt.s32.totalorder %s17, 3
      %p105 = pnand %p103, %p104
      %p106 = pneg %p105
      // Predicated region
      $region9: #{tpu_custom_call.1} parent=5 // pred_check
        _
      $region10: #{tpu_custom_call.1} parent=5 // pred_check_branch
        %108 = sbr.rel (%p105) target = $region12
      $region11: #{tpu_custom_call.1} parent=5 // pred_region
        %s109 = ssub.s32 %s17, 1
      $region12: #{tpu_custom_call.1} parent=5 // pred_fallthru
        _
      %p110 = scmp.lt.s32.totalorder %s17, 2
      // Predicated region
      $region13: #{tpu_custom_call.1} parent=5 // pred_check
        %p111 = pneg %p110
      $region14: #{tpu_custom_call.1} parent=5 // pred_check_branch
        %113 = sbr.rel (%p111) target = $region16
      $region15: #{tpu_custom_call.1} parent=5 // pred_region
        // Predicated region
        $region17: #{tpu_custom_call.1} parent=15 // pred_check
          %p114 = pneg %p37
        $region18: #{tpu_custom_call.1} parent=15 // pred_check_branch
          %116 = sbr.rel (%p114) target = $region20
        $region19: #{tpu_custom_call.1} parent=15 // pred_region
          %s117 = sand.u32 %s27, 1
          %s118 = scalar_lea.sflag [#allocation3], %s117
          %s119 = sand.u32 %s27, 1
          %s120 = smul.addr %s119, 48
          %s121 = scalar_lea.vmem [#allocation2], %s120
          %123 = vsyncadd %s118, 0
          %s124 = smul.addr %s17, 6
          %s125 = smul.addr %s124, 8
          %s126 = scalar_lea.hbm %s0, %s125
          %s128 = sshll.u32 %s126, 4
          %s129 = int_to_ptr.hbm [resolvable:$true] %s128
          %s130 = sshll.u32 %s121, 4
          %s131 = int_to_ptr.vmem [resolvable:$true] %s130
          %133 = dma.hbm_to_vmem [thread:$0]  %s129, 768, %s131, %s118
        $region20: #{tpu_custom_call.1} parent=15 // pred_fallthru
          _
        // Predicated region
        $region21: #{tpu_custom_call.1} parent=15 // pred_check
          %p134 = pneg %p63
        $region22: #{tpu_custom_call.1} parent=15 // pred_check_branch
          %136 = sbr.rel (%p134) target = $region24
        $region23: #{tpu_custom_call.1} parent=15 // pred_region
          %s137 = sand.u32 %s53, 1
          %s138 = scalar_lea.sflag [#allocation6], %s137
          %s139 = sand.u32 %s53, 1
          %s140 = smul.addr %s139, 16
          %s141 = scalar_lea.vmem [#allocation5], %s140
          %143 = vsyncadd %s138, 0
          %s144 = smul.addr %s17, 2
          %s145 = smul.addr %s144, 8
          %s146 = scalar_lea.hbm %s1, %s145
          %s148 = sshll.u32 %s146, 4
          %s149 = int_to_ptr.hbm [resolvable:$true] %s148
          %s150 = sshll.u32 %s141, 4
          %s151 = int_to_ptr.vmem [resolvable:$true] %s150
          %153 = dma.hbm_to_vmem [thread:$0]  %s149, 256, %s151, %s138
        $region24: #{tpu_custom_call.1} parent=15 // pred_fallthru
          _
      $region16: #{tpu_custom_call.1} parent=5 // pred_fallthru
        _
      %p154 = scmp.le.s32.totalorder 1, %s17
      %p155 = scmp.lt.s32.totalorder %s17, 3
      %p156 = pnand %p154, %p155
      %p157 = pneg %p156
      // Predicated region
      $region25: #{tpu_custom_call.1} parent=5 // pred_check
        _
      $region26: #{tpu_custom_call.1} parent=5 // pred_check_branch
        %159 = sbr.rel (%p156) target = $region28
      $region27: #{tpu_custom_call.1} parent=5 // pred_region
        %s160 = ssub.s32 %s17, 1
        %s161 = sand.u32 %s30, 1
        %s162 = scalar_lea.sflag [#allocation3], %s161
        %s163 = sand.u32 %s30, 1
        %s164 = smul.addr %s163, 48
        %s165 = scalar_lea.vmem [#allocation2], %s164
        // Predicated region
        $region29: #{tpu_custom_call.1} parent=27 // pred_check
          %p166 = pneg %p43
        $region30: #{tpu_custom_call.1} parent=27 // pred_check_branch
          %168 = sbr.rel (%p166) target = $region32
        $region31: #{tpu_custom_call.1} parent=27 // pred_region
          %170 = dma.done %s162, 768
        $region32: #{tpu_custom_call.1} parent=27 // pred_fallthru
          _
        %s171 = sand.u32 %s56, 1
        %s172 = scalar_lea.sflag [#allocation6], %s171
        %s173 = sand.u32 %s56, 1
        %s174 = smul.addr %s173, 16
        %s175 = scalar_lea.vmem [#allocation5], %s174
        // Predicated region
        $region33: #{tpu_custom_call.1} parent=27 // pred_check
          %p176 = pneg %p69
        $region34: #{tpu_custom_call.1} parent=27 // pred_check_branch
          %178 = sbr.rel (%p176) target = $region36
        $region35: #{tpu_custom_call.1} parent=27 // pred_region
          %180 = dma.done %s172, 256
        $region36: #{tpu_custom_call.1} parent=27 // pred_fallthru
          _
        %s181 = sand.u32 %s30, 1
        %s182 = scalar_lea.sflag [#allocation3], %s181
        %s183 = sand.u32 %s30, 1
        %s184 = smul.addr %s183, 48
        %s185 = scalar_lea.vmem [#allocation2], %s184
        %p186 = pneg %p43
        %p187 = pneg %p40
        %s188 = sand.u32 %s56, 1
        %s189 = scalar_lea.sflag [#allocation6], %s188
        %s190 = sand.u32 %s56, 1
        %s191 = smul.addr %s190, 16
        %s192 = scalar_lea.vmem [#allocation5], %s191
        %p193 = pneg %p69
        %p194 = pneg %p66
        %p195 = pneg %p95
        %p196 = pneg %p92
        %s197 = sand.u32 %s82, 1
        %s198 = scalar_lea.sflag [#allocation4], %s197
        %s199 = sand.u32 %s82, 1
        %s200 = smul.addr %s199, 128
        %s201 = scalar_lea.vmem [#allocation7], %s200
        %v202 = vld [vmem:[%s165] sm:$0xff]
        %v203 = vld [vmem:[%s165 + $0x8] sm:$0xff]
        %v204 = vld [vmem:[%s165 + $0x10] sm:$0xff]
        %v205 = vld [vmem:[%s165 + $0x18] sm:$0xff]
        %v206 = vld [vmem:[%s165 + $0x20] sm:$0xff]
        %v207 = vld [vmem:[%s165 + $0x28] sm:$0xff]
        %208 = vst [vmem:[%s201] sm:$0xff] %v202
        %209 = vst [vmem:[%s201 + $0x8] sm:$0xff] %v203
        %210 = vst [vmem:[%s201 + $0x10] sm:$0xff] %v204
        %211 = vst [vmem:[%s201 + $0x18] sm:$0xff] %v205
        %212 = vst [vmem:[%s201 + $0x20] sm:$0xff] %v206
        %213 = vst [vmem:[%s201 + $0x28] sm:$0xff] %v207
        %v214 = vld [vmem:[%s175] sm:$0xff]
        %v215 = vld [vmem:[%s175 + $0x8] sm:$0xff]
        %216 = vst [vmem:[%s201 + $0x30] sm:$0xff] %v214
        %217 = vst [vmem:[%s201 + $0x38] sm:$0xff] %v215
        %v218 = vld [vmem:[%s165] sm:$0xff]
        %v219 = vld [vmem:[%s165 + $0x8] sm:$0xff]
        %v220 = vld [vmem:[%s165 + $0x10] sm:$0xff]
        %v221 = vld [vmem:[%s165 + $0x18] sm:$0xff]
        %v222 = vld [vmem:[%s165 + $0x20] sm:$0xff]
        %v223 = vld [vmem:[%s165 + $0x28] sm:$0xff]
        %224 = vst [vmem:[%s201 + $0x40] sm:$0xff] %v218
        %225 = vst [vmem:[%s201 + $0x48] sm:$0xff] %v219
        %226 = vst [vmem:[%s201 + $0x50] sm:$0xff] %v220
        %227 = vst [vmem:[%s201 + $0x58] sm:$0xff] %v221
        %228 = vst [vmem:[%s201 + $0x60] sm:$0xff] %v222
        %229 = vst [vmem:[%s201 + $0x68] sm:$0xff] %v223
        %v230 = vld [vmem:[%s175] sm:$0xff]
        %v231 = vld [vmem:[%s175 + $0x8] sm:$0xff]
        %232 = vst [vmem:[%s201 + $0x70] sm:$0xff] %v230
        %233 = vst [vmem:[%s201 + $0x78] sm:$0xff] %v231
        %s234 = sand.u32 %s82, 1
        %s235 = scalar_lea.sflag [#allocation4], %s234
        %s236 = sand.u32 %s82, 1
        %s237 = smul.addr %s236, 128
        %s238 = scalar_lea.vmem [#allocation7], %s237
        // Predicated region
        $region37: #{tpu_custom_call.1} parent=27 // pred_check
          %p239 = pneg %p92
        $region38: #{tpu_custom_call.1} parent=27 // pred_check_branch
          %241 = sbr.rel (%p239) target = $region40
        $region39: #{tpu_custom_call.1} parent=27 // pred_region
          %243 = vsyncadd %s235, 0
          %s244 = smul.addr %s22, 16
          %s245 = smul.addr %s244, 8
          %s246 = scalar_lea.hbm %s2, %s245
          %s248 = sshll.u32 %s238, 4
          %s249 = int_to_ptr.vmem [resolvable:$true] %s248
          %s250 = sshll.u32 %s246, 4
          %s251 = int_to_ptr.hbm [resolvable:$true] %s250
          %253 = dma.vmem_to_hbm [thread:$0]  %s249, 2048, %s251, %s235
        $region40: #{tpu_custom_call.1} parent=27 // pred_fallthru
          _
      $region28: #{tpu_custom_call.1} parent=5 // pred_fallthru
        _
      %p254 = scmp.le.s32.totalorder 2, %s17
      // Predicated region
      $region41: #{tpu_custom_call.1} parent=5 // pred_check
        %p255 = pneg %p254
      $region42: #{tpu_custom_call.1} parent=5 // pred_check_branch
        %257 = sbr.rel (%p255) target = $region44
      $region43: #{tpu_custom_call.1} parent=5 // pred_region
        %s258 = ssub.s32 %s17, 2
        // Predicated region
        $region45: #{tpu_custom_call.1} parent=43 // pred_check
          %p259 = pneg %p98
        $region46: #{tpu_custom_call.1} parent=43 // pred_check_branch
          %261 = sbr.rel (%p259) target = $region48
        $region47: #{tpu_custom_call.1} parent=43 // pred_region
          %s262 = sand.u32 %s83, 1
          %s263 = scalar_lea.sflag [#allocation4], %s262
          %s264 = sand.u32 %s83, 1
          %s265 = smul.addr %s264, 128
          %s266 = scalar_lea.vmem [#allocation7], %s265
          %268 = dma.done %s263, 2048
        $region48: #{tpu_custom_call.1} parent=43 // pred_fallthru
          _
      $region44: #{tpu_custom_call.1} parent=5 // pred_fallthru
        _
    $region6: #{tpu_custom_call.1} parent=1 // loop_footer
      %s21 = sadd.s32 1, %s17
    $region7: #{tpu_custom_call.1} parent=1 // loop_footer_branch
      %16 = sbr.rel target = $region3
    $region8: #{tpu_custom_call.1} parent=1 // loop_exit
      _
    %269 = vsyncpa [#allocation3], 1
    %s270 = scalar_lea.sflag [#allocation3], 1
    %271 = vsyncpa %s270, 1
    %272 = vsyncpa [#allocation6], 1
    %s273 = scalar_lea.sflag [#allocation6], 1
    %274 = vsyncpa %s273, 1
    %275 = vsyncpa [#allocation4], 1
    %s276 = scalar_lea.sflag [#allocation4], 1
    %277 = vsyncpa %s276, 1

</llo_original>
